<compile_context>
chip_gen: v5e
topology: v5e:2x2
jax: 0.10.0
libtpu: 0.0.40
codegen_flags: <defaults>
</compile_context>

<pallas_src>
import functools

import jax
import jax.numpy as jnp
from jax.experimental import pallas as pl
from jax.experimental.pallas import tpu as pltpu

LN_EPS = 1e-5  # torch.nn.LayerNorm default eps


def _kernel_body(x_ref, params_ref, w_ref, o_ref, bits_ref, dropout_p):
    x = x_ref[...].astype(jnp.float32)

    # LayerNorm over the last (lane) dim, f32 math.
    mean = jnp.mean(x, axis=-1, keepdims=True)
    var = jnp.mean(jnp.square(x - mean), axis=-1, keepdims=True)
    xn = (x - mean) * jax.lax.rsqrt(var + LN_EPS)

    gamma = params_ref[0:1, :]
    beta = params_ref[1:2, :]
    bias = params_ref[2:3, :]
    y = xn * gamma + beta

    # sublayer := Linear(H, H): bf16 inputs, f32 accumulation on the MXU.
    z = jnp.dot(y.astype(jnp.bfloat16), w_ref[...],
                preferred_element_type=jnp.float32) + bias

    if dropout_p > 0.0:
        # Inverted dropout via direct uint32 threshold compare.
        thr = min(int(round(dropout_p * 4294967296.0)), 4294967295)
        keep = bits_ref[...] >= jnp.uint32(thr)
        z = jnp.where(keep, z * (1.0 / (1.0 - dropout_p)), 0.0)

    # Residual add.
    o_ref[...] = (x + z).astype(o_ref.dtype)


def sublayer_connection_kernel_nodrop(x_ref, params_ref, w_ref, o_ref):
    _kernel_body(x_ref, params_ref, w_ref, o_ref, None, 0.0)


def sublayer_connection_kernel_drop(x_ref, params_ref, w_ref, bits_ref, o_ref,
                                    *, dropout_p):
    _kernel_body(x_ref, params_ref, w_ref, o_ref, bits_ref, dropout_p)


def _pick_row_tile(n, requested):
    """Largest multiple of 8 that divides n and is <= requested."""
    t = max(8, (min(requested, n) // 8) * 8)
    while n % t != 0:
        t -= 8
    return t


def sublayer_connection(x, gamma, beta, w, b, *, dropout_p=0.0, rng_key=None,
                        row_tile=256):
    B, S, H = x.shape
    N = B * S
    assert N % 8 == 0, "B*S must be a multiple of 8"
    rt = _pick_row_tile(N, row_tile)

    xf = x.reshape(N, H)
    params = jnp.stack([gamma, beta, b]).astype(jnp.float32)   # (3, H)
    w_bf16 = w.astype(jnp.bfloat16)

    use_dropout = dropout_p > 0.0
    inputs = [xf, params, w_bf16]
    in_specs = [
        pl.BlockSpec((rt, H), lambda i: (i, 0)),      # x rows
        pl.BlockSpec((3, H), lambda i: (0, 0)),       # gamma / beta / bias
        pl.BlockSpec((H, H), lambda i: (0, 0)),       # W (bf16, resident)
    ]
    if use_dropout:
        assert rng_key is not None, "rng_key required when dropout_p > 0"
        bits = jax.random.bits(rng_key, (N, H), dtype=jnp.uint32)
        inputs.append(bits)
        in_specs.append(pl.BlockSpec((rt, H), lambda i: (i, 0)))
        kernel = functools.partial(sublayer_connection_kernel_drop,
                                   dropout_p=float(dropout_p))
    else:
        kernel = sublayer_connection_kernel_nodrop

    # VMEM budget: double-buffered x / out / bits blocks + resident W + params.
    bits_bytes = rt * H * 4 if use_dropout else 0
    vmem_bytes = (2 * (rt * H * 4 + rt * H * x.dtype.itemsize + bits_bytes)
                  + 2 * H * H * 2 + 2 * 3 * H * 4 + (8 << 20))
    vmem_bytes = int(min(vmem_bytes, 48 << 20))

    out = pl.pallas_call(
        kernel,
        out_shape=jax.ShapeDtypeStruct((N, H), x.dtype),
        grid_spec=pltpu.PrefetchScalarGridSpec(
            num_scalar_prefetch=0,
            grid=(N // rt,),
            in_specs=in_specs,
            out_specs=pl.BlockSpec((rt, H), lambda i: (i, 0)),
        ),
        compiler_params=pltpu.CompilerParams(
            dimension_semantics=("parallel",),
            vmem_limit_bytes=vmem_bytes),
    )(*inputs)
    return out.reshape(B, S, H)


def reference_eval(x, gamma, beta, w, b):
    # Pure-JAX reference of forward() with dropout in eval mode (identity),
    # matching the kernel's bf16-input / f32-accumulate matmul.
    mean = jnp.mean(x, axis=-1, keepdims=True)
    var = jnp.mean(jnp.square(x - mean), axis=-1, keepdims=True)
    y = (x - mean) * jax.lax.rsqrt(var + LN_EPS) * gamma + beta
    z = jnp.einsum("bsh,hk->bsk", y.astype(jnp.bfloat16),
                   w.astype(jnp.bfloat16),
                   preferred_element_type=jnp.float32) + b
    return x + z


if __name__ == "__main__":
    B, S, H = 2, 128, 128        # batch, seq, hidden ("size" of LayerNorm)
    dropout_p = 0.1

    key = jax.random.PRNGKey(0)
    kx, kw, kb, kd = jax.random.split(key, 4)

    x = jax.random.normal(kx, (B, S, H), dtype=jnp.float32)
    # LayerNorm params (PyTorch default init): gamma=1, beta=0.
    gamma = jnp.ones((H,), dtype=jnp.float32)
    beta = jnp.zeros((H,), dtype=jnp.float32)
    # Deterministic sublayer (Linear(H, H)) params.
    w = jax.random.normal(kw, (H, H), dtype=jnp.float32) / jnp.sqrt(H)
    b = jax.random.normal(kb, (H,), dtype=jnp.float32) * 0.01

    # Correctness check in eval mode (dropout_p=0 -> deterministic).
    out_eval = sublayer_connection(x, gamma, beta, w, b, dropout_p=0.0)
    ref = reference_eval(x, gamma, beta, w, b)
    jax.block_until_ready(out_eval)
    assert out_eval.shape == (B, S, H)
    assert jnp.allclose(out_eval, ref, atol=1e-2, rtol=1e-2), "mismatch vs reference"

    # Train-mode run with dropout (deterministic via fixed key).
    out_train = sublayer_connection(x, gamma, beta, w, b,
                                    dropout_p=dropout_p, rng_key=kd)
    jax.block_until_ready(out_train)
    assert out_train.shape == (B, S, H)
    assert bool(jnp.all(jnp.isfinite(out_train)))

    print("KERNEL_OK")
</pallas_src>

<mosaic_0001>
module attributes {stable_mosaic.version = 11 : i64} {
  func.func @sublayer_connection_kernel_nodrop(%arg0: i32, %arg1: memref<256x128xf32, #tpu.memory_space<vmem>>, %arg2: memref<3x128xf32, #tpu.memory_space<vmem>>, %arg3: memref<128x128xbf16, #tpu.memory_space<vmem>>, %arg4: memref<256x128xf32, #tpu.memory_space<vmem>>) attributes {dimension_semantics = [#tpu.dimension_semantics<parallel>], iteration_bounds = array<i64: 1>, scalar_prefetch = 0 : i64, scratch_operands = 0 : i64, tpu.core_type = #tpu.core_type<tc>, window_params = [{transform_indices = @transform_0, window_bounds = array<i64: 256, 128>}, {pipeline_mode = #tpu.pipeline_mode<synchronous>, transform_indices = @transform_1, window_bounds = array<i64: 3, 128>}, {pipeline_mode = #tpu.pipeline_mode<synchronous>, transform_indices = @transform_2, window_bounds = array<i64: 128, 128>}, {transform_indices = @transform_3, window_bounds = array<i64: 256, 128>}]} {
    %c0 = arith.constant 0 : index
    %c0_0 = arith.constant 0 : index
    %0 = vector.load %arg1[%c0, %c0_0] : memref<256x128xf32, #tpu.memory_space<vmem>>, vector<256x128xf32>
    %cst = arith.constant dense<0.000000e+00> : vector<256xf32>
    %1 = vector.multi_reduction <add>, %0, %cst [1] : vector<256x128xf32> to vector<256xf32>
    %2 = vector.shape_cast %1 : vector<256xf32> to vector<256x1xf32>
    %cst_1 = arith.constant 1.280000e+02 : f32
    %3 = vector.broadcast %cst_1 : f32 to vector<256x1xf32>
    %4 = arith.divf %2, %3 : vector<256x1xf32>
    %5 = vector.broadcast %4 : vector<256x1xf32> to vector<256x128xf32>
    %6 = arith.subf %0, %5 : vector<256x128xf32>
    %7 = arith.mulf %6, %6 : vector<256x128xf32>
    %cst_2 = arith.constant dense<0.000000e+00> : vector<256xf32>
    %8 = vector.multi_reduction <add>, %7, %cst_2 [1] : vector<256x128xf32> to vector<256xf32>
    %9 = vector.shape_cast %8 : vector<256xf32> to vector<256x1xf32>
    %cst_3 = arith.constant 1.280000e+02 : f32
    %10 = vector.broadcast %cst_3 : f32 to vector<256x1xf32>
    %11 = arith.divf %9, %10 : vector<256x1xf32>
    %12 = vector.broadcast %4 : vector<256x1xf32> to vector<256x128xf32>
    %13 = arith.subf %0, %12 : vector<256x128xf32>
    %cst_4 = arith.constant 9.99999974E-6 : f32
    %14 = vector.broadcast %cst_4 : f32 to vector<256x1xf32>
    %15 = arith.addf %11, %14 : vector<256x1xf32>
    %16 = math.rsqrt %15 : vector<256x1xf32>
    %17 = vector.broadcast %16 : vector<256x1xf32> to vector<256x128xf32>
    %18 = arith.mulf %13, %17 : vector<256x128xf32>
    %c0_5 = arith.constant 0 : index
    %c0_6 = arith.constant 0 : index
    %19 = vector.load %arg2[%c0_5, %c0_6] : memref<3x128xf32, #tpu.memory_space<vmem>>, vector<1x128xf32>
    %c1 = arith.constant 1 : index
    %c0_7 = arith.constant 0 : index
    %20 = vector.load %arg2[%c1, %c0_7] : memref<3x128xf32, #tpu.memory_space<vmem>>, vector<1x128xf32>
    %c2 = arith.constant 2 : index
    %c0_8 = arith.constant 0 : index
    %21 = vector.load %arg2[%c2, %c0_8] : memref<3x128xf32, #tpu.memory_space<vmem>>, vector<1x128xf32>
    %22 = vector.broadcast %19 : vector<1x128xf32> to vector<256x128xf32>
    %23 = arith.mulf %18, %22 : vector<256x128xf32>
    %24 = vector.broadcast %20 : vector<1x128xf32> to vector<256x128xf32>
    %25 = arith.addf %23, %24 : vector<256x128xf32>
    %26 = arith.truncf %25 : vector<256x128xf32> to vector<256x128xbf16>
    %c0_9 = arith.constant 0 : index
    %c0_10 = arith.constant 0 : index
    %27 = vector.load %arg3[%c0_9, %c0_10] : memref<128x128xbf16, #tpu.memory_space<vmem>>, vector<128x128xbf16>
    %cst_11 = arith.constant dense<0.000000e+00> : vector<256x128xf32>
    %28 = tpu.matmul %26, %27, %cst_11 {dimension_numbers = #tpu.dot_dimension_numbers<[1], [0], [0], [1], [0, 0, 1, 1], [], []>} : vector<256x128xbf16>, vector<128x128xbf16>, vector<256x128xf32> -> vector<256x128xf32>
    %29 = vector.broadcast %21 : vector<1x128xf32> to vector<256x128xf32>
    %30 = arith.addf %28, %29 : vector<256x128xf32>
    %31 = arith.addf %0, %30 : vector<256x128xf32>
    %c0_12 = arith.constant 0 : index
    %c0_13 = arith.constant 0 : index
    %32 = vector.load %arg4[%c0_12, %c0_13] : memref<256x128xf32, #tpu.memory_space<vmem>>, vector<256x128xf32>
    tpu.vector_store %arg4[%c0_12, %c0_13], %31 {strides = array<i32>} : memref<256x128xf32, #tpu.memory_space<vmem>>, vector<256x128xf32>,
    return
  }
  func.func @transform_0(%arg0: i32) -> (i32, i32) {
    %c0_i32 = arith.constant 0 : i32
    %c0_i32_0 = arith.constant 0 : i32
    return %arg0, %c0_i32 : i32, i32
  }
  func.func @transform_1(%arg0: i32) -> (i32, i32) {
    %c0_i32 = arith.constant 0 : i32
    %c0_i32_0 = arith.constant 0 : i32
    %c0_i32_1 = arith.constant 0 : i32
    return %c0_i32, %c0_i32_0 : i32, i32
  }
  func.func @transform_2(%arg0: i32) -> (i32, i32) {
    %c0_i32 = arith.constant 0 : i32
    %c0_i32_0 = arith.constant 0 : i32
    %c0_i32_1 = arith.constant 0 : i32
    return %c0_i32, %c0_i32_0 : i32, i32
  }
  func.func @transform_3(%arg0: i32) -> (i32, i32) {
    %c0_i32 = arith.constant 0 : i32
    %c0_i32_0 = arith.constant 0 : i32
    return %arg0, %c0_i32 : i32, i32
  }
}

</mosaic_0001>

<llo_original>
// kernel: tpu_custom_call.1
$region0: #{tpu_custom_call.1}
  #allocation0 [shape = 'u32[]', space=smem, size = 0x4, offset = 0x4, fixed_abs, tag = 'smem constant byte address 0x4 - core index']
  #allocation1 [shape = 'u32[72,128]{1,0:T(1,128)}', space=vmem, size = 0x9000, scoped, tag = 'internal scratch']
  %s0 = inlined_call_operand.hbm [shape: f32[256,128], index: 0, kind: input, shape index: {}]
  %s1 = inlined_call_operand.hbm [shape: f32[3,128], index: 1, kind: input, shape index: {}]
  %s2 = inlined_call_operand.hbm [shape: bf16[128,128], index: 2, kind: input, shape index: {}]
  %s3 = inlined_call_operand.hbm [shape: f32[256,128], index: 3, kind: output, shape index: {}]
  %s4 = sld [smem:[#allocation0]]
  $region34: #{tpu_custom_call.1} parent=0
    _
  %s6 = ssub.s32 1, %s4
  %s7 = scalar_select 0, %s6, %s4
  $region1: #{tpu_custom_call.1} parent=0
    #allocation2 [shape = 'u8[131072]{0}', space=vmem, size = 0x20000, scoped, tag = 'input window, operand 0, single buffered']
    #allocation3 [shape = 's32[1]{0}', space=sflag, size = 0x4, scoped, tag = 'scoped memory for tpu_custom_call.1']
    #allocation4 [shape = 's32[1]{0}', space=sflag, size = 0x4, scoped, tag = 'scoped memory for tpu_custom_call.1']
    #allocation5 [shape = 'u8[2048]{0}', space=vmem, size = 0x800, scoped, tag = 'input window, operand 1, single buffered']
    #allocation6 [shape = 's32[1]{0}', space=sflag, size = 0x4, scoped, tag = 'scoped memory for tpu_custom_call.1']
    #allocation7 [shape = 'u8[32768]{0}', space=vmem, size = 0x8000, scoped, tag = 'input window, operand 2, single buffered']
    #allocation8 [shape = 'u8[131072]{0}', space=vmem, size = 0x20000, scoped, tag = 'output window, operand 0, single buffered']
    %8 = vsyncpa [#allocation3], 0
    %9 = vsyncpa [#allocation6], 0
    %10 = vsyncpa [#allocation4], 0
    // Predicated region
    $region2: #{tpu_custom_call.1} parent=1 // pred_check
      _
    $region3: #{tpu_custom_call.1} parent=1 // pred_check_branch
      %12 = sbr.rel (0) target = $region5
    $region4: #{tpu_custom_call.1} parent=1 // pred_region
      %14 = vsyncadd [#allocation3], 0
      %s15 = sshll.u32 %s0, 4
      %s16 = int_to_ptr.hbm [resolvable:$true] %s15
      %s17 = sshll.u32 [#allocation2], 4
      %s18 = int_to_ptr.vmem [resolvable:$true] %s17
      %23 = dma.hbm_to_vmem [thread:$0]  %s16, 4096, %s18, [#allocation3], 128, 128, 8
    $region5: #{tpu_custom_call.1} parent=1 // pred_fallthru
      _
    // Predicated region
    $region6: #{tpu_custom_call.1} parent=1 // pred_check
      _
    $region7: #{tpu_custom_call.1} parent=1 // pred_check_branch
      %25 = sbr.rel (0) target = $region9
    $region8: #{tpu_custom_call.1} parent=1 // pred_region
      %27 = vsyncadd [#allocation6], 0
      %s29 = sshll.u32 %s1, 4
      %s30 = int_to_ptr.hbm [resolvable:$true] %s29
      %s31 = sshll.u32 [#allocation5], 4
      %s32 = int_to_ptr.vmem [resolvable:$true] %s31
      %34 = dma.hbm_to_vmem [thread:$0]  %s30, 64, %s32, [#allocation6]
    $region9: #{tpu_custom_call.1} parent=1 // pred_fallthru
      _
    // Predicated region
    $region10: #{tpu_custom_call.1} parent=1 // pred_check
      _
    $region11: #{tpu_custom_call.1} parent=1 // pred_check_branch
      %36 = sbr.rel (0) target = $region13
    $region12: #{tpu_custom_call.1} parent=1 // pred_region
      %38 = vsyncadd [#allocation6], 0
      %s39 = sshll.u32 %s2, 4
      %s40 = int_to_ptr.hbm [resolvable:$true] %s39
      %s41 = sshll.u32 [#allocation7], 4
      %s42 = int_to_ptr.vmem [resolvable:$true] %s41
      %47 = dma.hbm_to_vmem [thread:$0]  %s40, 1024, %s42, [#allocation6], 64, 64, 4
    $region13: #{tpu_custom_call.1} parent=1 // pred_fallthru
      _
    // Predicated region
    $region14: #{tpu_custom_call.1} parent=1 // pred_check
      _
    $region15: #{tpu_custom_call.1} parent=1 // pred_check_branch
      %49 = sbr.rel (0) target = $region17
    $region16: #{tpu_custom_call.1} parent=1 // pred_region
      %51 = dma.done [#allocation3], 4096
    $region17: #{tpu_custom_call.1} parent=1 // pred_fallthru
      _
    // Predicated region
    $region18: #{tpu_custom_call.1} parent=1 // pred_check
      _
    $region19: #{tpu_custom_call.1} parent=1 // pred_check_branch
      %53 = sbr.rel (0) target = $region21
    $region20: #{tpu_custom_call.1} parent=1 // pred_region
      %55 = dma.done [#allocation6], 64
    $region21: #{tpu_custom_call.1} parent=1 // pred_fallthru
      _
    // Predicated region
    $region22: #{tpu_custom_call.1} parent=1 // pred_check
      _
    $region23: #{tpu_custom_call.1} parent=1 // pred_check_branch
      %57 = sbr.rel (0) target = $region25
    $region24: #{tpu_custom_call.1} parent=1 // pred_region
      %59 = dma.done [#allocation6], 1024
    $region25: #{tpu_custom_call.1} parent=1 // pred_fallthru
      _
    %v60 = vld [vmem:[#allocation2] sm:$0xff]
    %v61 = vld [vmem:[#allocation2 + $0x8] sm:$0xff]
    %v62 = vld [vmem:[#allocation2 + $0x10] sm:$0xff]
    %v63 = vld [vmem:[#allocation2 + $0x18] sm:$0xff]
    %v64 = vld [vmem:[#allocation2 + $0x20] sm:$0xff]
    %v65 = vld [vmem:[#allocation2 + $0x28] sm:$0xff]
    %v66 = vld [vmem:[#allocation2 + $0x30] sm:$0xff]
    %v67 = vld [vmem:[#allocation2 + $0x38] sm:$0xff]
    %v68 = vld [vmem:[#allocation2 + $0x40] sm:$0xff]
    %v69 = vld [vmem:[#allocation2 + $0x48] sm:$0xff]
    %v70 = vld [vmem:[#allocation2 + $0x50] sm:$0xff]
    %v71 = vld [vmem:[#allocation2 + $0x58] sm:$0xff]
    %v72 = vld [vmem:[#allocation2 + $0x60] sm:$0xff]
    %v73 = vld [vmem:[#allocation2 + $0x68] sm:$0xff]
    %v74 = vld [vmem:[#allocation2 + $0x70] sm:$0xff]
    %v75 = vld [vmem:[#allocation2 + $0x78] sm:$0xff]
    %v76 = vld [vmem:[#allocation2 + $0x80] sm:$0xff]
    %v77 = vld [vmem:[#allocation2 + $0x88] sm:$0xff]
    %v78 = vld [vmem:[#allocation2 + $0x90] sm:$0xff]
    %v79 = vld [vmem:[#allocation2 + $0x98] sm:$0xff]
    %v80 = vld [vmem:[#allocation2 + $0xa0] sm:$0xff]
    %v81 = vld [vmem:[#allocation2 + $0xa8] sm:$0xff]
    %v82 = vld [vmem:[#allocation2 + $0xb0] sm:$0xff]
    %v83 = vld [vmem:[#allocation2 + $0xb8] sm:$0xff]
    %v84 = vld [vmem:[#allocation2 + $0xc0] sm:$0xff]
    %v85 = vld [vmem:[#allocation2 + $0xc8] sm:$0xff]
    %v86 = vld [vmem:[#allocation2 + $0xd0] sm:$0xff]
    %v87 = vld [vmem:[#allocation2 + $0xd8] sm:$0xff]
    %v88 = vld [vmem:[#allocation2 + $0xe0] sm:$0xff]
    %v89 = vld [vmem:[#allocation2 + $0xe8] sm:$0xff]
    %v90 = vld [vmem:[#allocation2 + $0xf0] sm:$0xff]
    %v91 = vld [vmem:[#allocation2 + $0xf8] sm:$0xff]
    %92 = vadd.xlane.f32.xlu0 %v60
    %v93 = vpop.xlane.xlu0 %92
    %94 = vadd.xlane.f32.xlu0 %v61
    %v95 = vpop.xlane.xlu0 %94
    %96 = vadd.xlane.f32.xlu0 %v62
    %v97 = vpop.xlane.xlu0 %96
    %98 = vadd.xlane.f32.xlu0 %v63
    %v99 = vpop.xlane.xlu0 %98
    %100 = vadd.xlane.f32.xlu0 %v64
    %v101 = vpop.xlane.xlu0 %100
    %102 = vadd.xlane.f32.xlu0 %v65
    %v103 = vpop.xlane.xlu0 %102
    %104 = vadd.xlane.f32.xlu0 %v66
    %v105 = vpop.xlane.xlu0 %104
    %106 = vadd.xlane.f32.xlu0 %v67
    %v107 = vpop.xlane.xlu0 %106
    %108 = vadd.xlane.f32.xlu0 %v68
    %v109 = vpop.xlane.xlu0 %108
    %110 = vadd.xlane.f32.xlu0 %v69
    %v111 = vpop.xlane.xlu0 %110
    %112 = vadd.xlane.f32.xlu0 %v70
    %v113 = vpop.xlane.xlu0 %112
    %114 = vadd.xlane.f32.xlu0 %v71
    %v115 = vpop.xlane.xlu0 %114
    %116 = vadd.xlane.f32.xlu0 %v72
    %v117 = vpop.xlane.xlu0 %116
    %118 = vadd.xlane.f32.xlu0 %v73
    %v119 = vpop.xlane.xlu0 %118
    %120 = vadd.xlane.f32.xlu0 %v74
    %v121 = vpop.xlane.xlu0 %120
    %122 = vadd.xlane.f32.xlu0 %v75
    %v123 = vpop.xlane.xlu0 %122
    %124 = vadd.xlane.f32.xlu0 %v76
    %v125 = vpop.xlane.xlu0 %124
    %126 = vadd.xlane.f32.xlu0 %v77
    %v127 = vpop.xlane.xlu0 %126
    %128 = vadd.xlane.f32.xlu0 %v78
    %v129 = vpop.xlane.xlu0 %128
    %130 = vadd.xlane.f32.xlu0 %v79
    %v131 = vpop.xlane.xlu0 %130
    %132 = vadd.xlane.f32.xlu0 %v80
    %v133 = vpop.xlane.xlu0 %132
    %134 = vadd.xlane.f32.xlu0 %v81
    %v135 = vpop.xlane.xlu0 %134
    %136 = vadd.xlane.f32.xlu0 %v82
    %v137 = vpop.xlane.xlu0 %136
    %138 = vadd.xlane.f32.xlu0 %v83
    %v139 = vpop.xlane.xlu0 %138
    %140 = vadd.xlane.f32.xlu0 %v84
    %v141 = vpop.xlane.xlu0 %140
    %142 = vadd.xlane.f32.xlu0 %v85
    %v143 = vpop.xlane.xlu0 %142
    %144 = vadd.xlane.f32.xlu0 %v86
    %v145 = vpop.xlane.xlu0 %144
    %146 = vadd.xlane.f32.xlu0 %v87
    %v147 = vpop.xlane.xlu0 %146
    %148 = vadd.xlane.f32.xlu0 %v88
    %v149 = vpop.xlane.xlu0 %148
    %150 = vadd.xlane.f32.xlu0 %v89
    %v151 = vpop.xlane.xlu0 %150
    %152 = vadd.xlane.f32.xlu0 %v90
    %v153 = vpop.xlane.xlu0 %152
    %154 = vadd.xlane.f32.xlu0 %v91
    %v155 = vpop.xlane.xlu0 %154
    %v156 = vrcp.pop 128.0
    %v157 = vmul.f32 128.0, %v156
    %v158 = vsub.f32 1.0, %v157
    %v159 = vmul.f32 %v156, %v158
    %v160 = vadd.f32 %v156, %v159
    %vm161 = vweird.f32 %v156
    %v162 = vsel %vm161, %v156, %v160
    %v163 = vmul.f32 %v93, %v162
    %v164 = vmul.f32 %v95, %v162
    %v165 = vmul.f32 %v97, %v162
    %v166 = vmul.f32 %v99, %v162
    %v167 = vmul.f32 %v101, %v162
    %v168 = vmul.f32 %v103, %v162
    %v169 = vmul.f32 %v105, %v162
    %v170 = vmul.f32 %v107, %v162
    %v171 = vmul.f32 %v109, %v162
    %v172 = vmul.f32 %v111, %v162
    %v173 = vmul.f32 %v113, %v162
    %v174 = vmul.f32 %v115, %v162
    %v175 = vmul.f32 %v117, %v162
    %v176 = vmul.f32 %v119, %v162
    %v177 = vmul.f32 %v121, %v162
    %v178 = vmul.f32 %v123, %v162
    %v179 = vmul.f32 %v125, %v162
    %v180 = vmul.f32 %v127, %v162
    %v181 = vmul.f32 %v129, %v162
    %v182 = vmul.f32 %v131, %v162
    %v183 = vmul.f32 %v133, %v162
    %v184 = vmul.f32 %v135, %v162
    %v185 = vmul.f32 %v137, %v162
    %v186 = vmul.f32 %v139, %v162
    %v187 = vmul.f32 %v141, %v162
    %v188 = vmul.f32 %v143, %v162
    %v189 = vmul.f32 %v145, %v162
    %v190 = vmul.f32 %v147, %v162
    %v191 = vmul.f32 %v149, %v162
    %v192 = vmul.f32 %v151, %v162
    %v193 = vmul.f32 %v153, %v162
    %v194 = vmul.f32 %v155, %v162
    %v195 = vsub.f32 %v60, %v163
    %v196 = vsub.f32 %v61, %v164
    %v197 = vsub.f32 %v62, %v165
    %v198 = vsub.f32 %v63, %v166
    %v199 = vsub.f32 %v64, %v167
    %v200 = vsub.f32 %v65, %v168
    %v201 = vsub.f32 %v66, %v169
    %v202 = vsub.f32 %v67, %v170
    %v203 = vsub.f32 %v68, %v171
    %v204 = vsub.f32 %v69, %v172
    %v205 = vsub.f32 %v70, %v173
    %v206 = vsub.f32 %v71, %v174
    %v207 = vsub.f32 %v72, %v175
    %v208 = vsub.f32 %v73, %v176
    %v209 = vsub.f32 %v74, %v177
    %v210 = vsub.f32 %v75, %v178
    %v211 = vsub.f32 %v76, %v179
    %v212 = vsub.f32 %v77, %v180
    %v213 = vsub.f32 %v78, %v181
    %v214 = vsub.f32 %v79, %v182
    %v215 = vsub.f32 %v80, %v183
    %v216 = vsub.f32 %v81, %v184
    %v217 = vsub.f32 %v82, %v185
    %v218 = vsub.f32 %v83, %v186
    %v219 = vsub.f32 %v84, %v187
    %v220 = vsub.f32 %v85, %v188
    %v221 = vsub.f32 %v86, %v189
    %v222 = vsub.f32 %v87, %v190
    %v223 = vsub.f32 %v88, %v191
    %v224 = vsub.f32 %v89, %v192
    %v225 = vsub.f32 %v90, %v193
    %v226 = vsub.f32 %v91, %v194
    %v227 = vmul.f32 %v195, %v195
    %v228 = vmul.f32 %v196, %v196
    %v229 = vmul.f32 %v197, %v197
    %v230 = vmul.f32 %v198, %v198
    %v231 = vmul.f32 %v199, %v199
    %v232 = vmul.f32 %v200, %v200
    %v233 = vmul.f32 %v201, %v201
    %v234 = vmul.f32 %v202, %v202
    %v235 = vmul.f32 %v203, %v203
    %v236 = vmul.f32 %v204, %v204
    %v237 = vmul.f32 %v205, %v205
    %v238 = vmul.f32 %v206, %v206
    %v239 = vmul.f32 %v207, %v207
    %v240 = vmul.f32 %v208, %v208
    %v241 = vmul.f32 %v209, %v209
    %v242 = vmul.f32 %v210, %v210
    %v243 = vmul.f32 %v211, %v211
    %v244 = vmul.f32 %v212, %v212
    %v245 = vmul.f32 %v213, %v213
    %v246 = vmul.f32 %v214, %v214
    %v247 = vmul.f32 %v215, %v215
    %v248 = vmul.f32 %v216, %v216
    %v249 = vmul.f32 %v217, %v217
    %v250 = vmul.f32 %v218, %v218
    %v251 = vmul.f32 %v219, %v219
    %v252 = vmul.f32 %v220, %v220
    %v253 = vmul.f32 %v221, %v221
    %v254 = vmul.f32 %v222, %v222
    %v255 = vmul.f32 %v223, %v223
    %v256 = vmul.f32 %v224, %v224
    %v257 = vmul.f32 %v225, %v225
    %v258 = vmul.f32 %v226, %v226
    %259 = vadd.xlane.f32.xlu0 %v227
    %v260 = vpop.xlane.xlu0 %259
    %261 = vadd.xlane.f32.xlu0 %v228
    %v262 = vpop.xlane.xlu0 %261
    %263 = vadd.xlane.f32.xlu0 %v229
    %v264 = vpop.xlane.xlu0 %263
    %265 = vadd.xlane.f32.xlu0 %v230
    %v266 = vpop.xlane.xlu0 %265
    %267 = vadd.xlane.f32.xlu0 %v231
    %v268 = vpop.xlane.xlu0 %267
    %269 = vadd.xlane.f32.xlu0 %v232
    %v270 = vpop.xlane.xlu0 %269
    %271 = vadd.xlane.f32.xlu0 %v233
    %v272 = vpop.xlane.xlu0 %271
    %273 = vadd.xlane.f32.xlu0 %v234
    %v274 = vpop.xlane.xlu0 %273
    %275 = vadd.xlane.f32.xlu0 %v235
    %v276 = vpop.xlane.xlu0 %275
    %277 = vadd.xlane.f32.xlu0 %v236
    %v278 = vpop.xlane.xlu0 %277
    %279 = vadd.xlane.f32.xlu0 %v237
    %v280 = vpop.xlane.xlu0 %279
    %281 = vadd.xlane.f32.xlu0 %v238
    %v282 = vpop.xlane.xlu0 %281
    %283 = vadd.xlane.f32.xlu0 %v239
    %v284 = vpop.xlane.xlu0 %283
    %285 = vadd.xlane.f32.xlu0 %v240
    %v286 = vpop.xlane.xlu0 %285
    %287 = vadd.xlane.f32.xlu0 %v241
    %v288 = vpop.xlane.xlu0 %287
    %289 = vadd.xlane.f32.xlu0 %v242
    %v290 = vpop.xlane.xlu0 %289
    %291 = vadd.xlane.f32.xlu0 %v243
    %v292 = vpop.xlane.xlu0 %291
    %293 = vadd.xlane.f32.xlu0 %v244
    %v294 = vpop.xlane.xlu0 %293
    %295 = vadd.xlane.f32.xlu0 %v245
    %v296 = vpop.xlane.xlu0 %295
    %297 = vadd.xlane.f32.xlu0 %v246
    %v298 = vpop.xlane.xlu0 %297
    %299 = vadd.xlane.f32.xlu0 %v247
    %v300 = vpop.xlane.xlu0 %299
    %301 = vadd.xlane.f32.xlu0 %v248
    %v302 = vpop.xlane.xlu0 %301
    %303 = vadd.xlane.f32.xlu0 %v249
    %v304 = vpop.xlane.xlu0 %303
    %305 = vadd.xlane.f32.xlu0 %v250
    %v306 = vpop.xlane.xlu0 %305
    %307 = vadd.xlane.f32.xlu0 %v251
    %v308 = vpop.xlane.xlu0 %307
    %309 = vadd.xlane.f32.xlu0 %v252
    %v310 = vpop.xlane.xlu0 %309
    %311 = vadd.xlane.f32.xlu0 %v253
    %v312 = vpop.xlane.xlu0 %311
    %313 = vadd.xlane.f32.xlu0 %v254
    %v314 = vpop.xlane.xlu0 %313
    %315 = vadd.xlane.f32.xlu0 %v255
    %v316 = vpop.xlane.xlu0 %315
    %317 = vadd.xlane.f32.xlu0 %v256
    %v318 = vpop.xlane.xlu0 %317
    %319 = vadd.xlane.f32.xlu0 %v257
    %v320 = vpop.xlane.xlu0 %319
    %321 = vadd.xlane.f32.xlu0 %v258
    %v322 = vpop.xlane.xlu0 %321
    %v323 = vmul.f32 %v260, %v162
    %v324 = vmul.f32 %v262, %v162
    %v325 = vmul.f32 %v264, %v162
    %v326 = vmul.f32 %v266, %v162
    %v327 = vmul.f32 %v268, %v162
    %v328 = vmul.f32 %v270, %v162
    %v329 = vmul.f32 %v272, %v162
    %v330 = vmul.f32 %v274, %v162
    %v331 = vmul.f32 %v276, %v162
    %v332 = vmul.f32 %v278, %v162
    %v333 = vmul.f32 %v280, %v162
    %v334 = vmul.f32 %v282, %v162
    %v335 = vmul.f32 %v284, %v162
    %v336 = vmul.f32 %v286, %v162
    %v337 = vmul.f32 %v288, %v162
    %v338 = vmul.f32 %v290, %v162
    %v339 = vmul.f32 %v292, %v162
    %v340 = vmul.f32 %v294, %v162
    %v341 = vmul.f32 %v296, %v162
    %v342 = vmul.f32 %v298, %v162
    %v343 = vmul.f32 %v300, %v162
    %v344 = vmul.f32 %v302, %v162
    %v345 = vmul.f32 %v304, %v162
    %v346 = vmul.f32 %v306, %v162
    %v347 = vmul.f32 %v308, %v162
    %v348 = vmul.f32 %v310, %v162
    %v349 = vmul.f32 %v312, %v162
    %v350 = vmul.f32 %v314, %v162
    %v351 = vmul.f32 %v316, %v162
    %v352 = vmul.f32 %v318, %v162
    %v353 = vmul.f32 %v320, %v162
    %v354 = vmul.f32 %v322, %v162
    %v355 = vadd.f32 %v323, 1e-05
    %v356 = vadd.f32 %v324, 1e-05
    %v357 = vadd.f32 %v325, 1e-05
    %v358 = vadd.f32 %v326, 1e-05
    %v359 = vadd.f32 %v327, 1e-05
    %v360 = vadd.f32 %v328, 1e-05
    %v361 = vadd.f32 %v329, 1e-05
    %v362 = vadd.f32 %v330, 1e-05
    %v363 = vadd.f32 %v331, 1e-05
    %v364 = vadd.f32 %v332, 1e-05
    %v365 = vadd.f32 %v333, 1e-05
    %v366 = vadd.f32 %v334, 1e-05
    %v367 = vadd.f32 %v335, 1e-05
    %v368 = vadd.f32 %v336, 1e-05
    %v369 = vadd.f32 %v337, 1e-05
    %v370 = vadd.f32 %v338, 1e-05
    %v371 = vadd.f32 %v339, 1e-05
    %v372 = vadd.f32 %v340, 1e-05
    %v373 = vadd.f32 %v341, 1e-05
    %v374 = vadd.f32 %v342, 1e-05
    %v375 = vadd.f32 %v343, 1e-05
    %v376 = vadd.f32 %v344, 1e-05
    %v377 = vadd.f32 %v345, 1e-05
    %v378 = vadd.f32 %v346, 1e-05
    %v379 = vadd.f32 %v347, 1e-05
    %v380 = vadd.f32 %v348, 1e-05
    %v381 = vadd.f32 %v349, 1e-05
    %v382 = vadd.f32 %v350, 1e-05
    %v383 = vadd.f32 %v351, 1e-05
    %v384 = vadd.f32 %v352, 1e-05
    %v385 = vadd.f32 %v353, 1e-05
    %v386 = vadd.f32 %v354, 1e-05
    %v387 = vrsqrt.pop %v355
    %v388 = vmul.f32 %v387, %v355
    %v389 = vmul.f32 %v388, %v387
    %v390 = vmul.f32 0.5, %v389
    %v391 = vsub.f32 1.5, %v390
    %v392 = vmul.f32 %v387, %v391
    %vm393 = vweird.f32 %v355
    %vm394 = vweird.f32 %v387
    %vm395 = vmor %vm393, %vm394
    %v396 = vsel %vm395, %v387, %v392
    %v397 = vrsqrt.pop %v356
    %v398 = vmul.f32 %v397, %v356
    %v399 = vmul.f32 %v398, %v397
    %v400 = vmul.f32 0.5, %v399
    %v401 = vsub.f32 1.5, %v400
    %v402 = vmul.f32 %v397, %v401
    %vm403 = vweird.f32 %v356
    %vm404 = vweird.f32 %v397
    %vm405 = vmor %vm403, %vm404
    %v406 = vsel %vm405, %v397, %v402
    %v407 = vrsqrt.pop %v357
    %v408 = vmul.f32 %v407, %v357
    %v409 = vmul.f32 %v408, %v407
    %v410 = vmul.f32 0.5, %v409
    %v411 = vsub.f32 1.5, %v410
    %v412 = vmul.f32 %v407, %v411
    %vm413 = vweird.f32 %v357
    %vm414 = vweird.f32 %v407
    %vm415 = vmor %vm413, %vm414
    %v416 = vsel %vm415, %v407, %v412
    %v417 = vrsqrt.pop %v358
    %v418 = vmul.f32 %v417, %v358
    %v419 = vmul.f32 %v418, %v417
    %v420 = vmul.f32 0.5, %v419
    %v421 = vsub.f32 1.5, %v420
    %v422 = vmul.f32 %v417, %v421
    %vm423 = vweird.f32 %v358
    %vm424 = vweird.f32 %v417
    %vm425 = vmor %vm423, %vm424
    %v426 = vsel %vm425, %v417, %v422
    %v427 = vrsqrt.pop %v359
    %v428 = vmul.f32 %v427, %v359
    %v429 = vmul.f32 %v428, %v427
    %v430 = vmul.f32 0.5, %v429
    %v431 = vsub.f32 1.5, %v430
    %v432 = vmul.f32 %v427, %v431
    %vm433 = vweird.f32 %v359
    %vm434 = vweird.f32 %v427
    %vm435 = vmor %vm433, %vm434
    %v436 = vsel %vm435, %v427, %v432
    %v437 = vrsqrt.pop %v360
    %v438 = vmul.f32 %v437, %v360
    %v439 = vmul.f32 %v438, %v437
    %v440 = vmul.f32 0.5, %v439
    %v441 = vsub.f32 1.5, %v440
    %v442 = vmul.f32 %v437, %v441
    %vm443 = vweird.f32 %v360
    %vm444 = vweird.f32 %v437
    %vm445 = vmor %vm443, %vm444
    %v446 = vsel %vm445, %v437, %v442
    %v447 = vrsqrt.pop %v361
    %v448 = vmul.f32 %v447, %v361
    %v449 = vmul.f32 %v448, %v447
    %v450 = vmul.f32 0.5, %v449
    %v451 = vsub.f32 1.5, %v450
    %v452 = vmul.f32 %v447, %v451
    %vm453 = vweird.f32 %v361
    %vm454 = vweird.f32 %v447
    %vm455 = vmor %vm453, %vm454
    %v456 = vsel %vm455, %v447, %v452
    %v457 = vrsqrt.pop %v362
    %v458 = vmul.f32 %v457, %v362
    %v459 = vmul.f32 %v458, %v457
    %v460 = vmul.f32 0.5, %v459
    %v461 = vsub.f32 1.5, %v460
    %v462 = vmul.f32 %v457, %v461
    %vm463 = vweird.f32 %v362
    %vm464 = vweird.f32 %v457
    %vm465 = vmor %vm463, %vm464
    %v466 = vsel %vm465, %v457, %v462
    %v467 = vrsqrt.pop %v363
    %v468 = vmul.f32 %v467, %v363
    %v469 = vmul.f32 %v468, %v467
    %v470 = vmul.f32 0.5, %v469
    %v471 = vsub.f32 1.5, %v470
    %v472 = vmul.f32 %v467, %v471
    %vm473 = vweird.f32 %v363
    %vm474 = vweird.f32 %v467
    %vm475 = vmor %vm473, %vm474
    %v476 = vsel %vm475, %v467, %v472
    %v477 = vrsqrt.pop %v364
    %v478 = vmul.f32 %v477, %v364
    %v479 = vmul.f32 %v478, %v477
    %v480 = vmul.f32 0.5, %v479
    %v481 = vsub.f32 1.5, %v480
    %v482 = vmul.f32 %v477, %v481
    %vm483 = vweird.f32 %v364
    %vm484 = vweird.f32 %v477
    %vm485 = vmor %vm483, %vm484
    %v486 = vsel %vm485, %v477, %v482
    %v487 = vrsqrt.pop %v365
    %v488 = vmul.f32 %v487, %v365
    %v489 = vmul.f32 %v488, %v487
    %v490 = vmul.f32 0.5, %v489
    %v491 = vsub.f32 1.5, %v490
    %v492 = vmul.f32 %v487, %v491
    %vm493 = vweird.f32 %v365
    %vm494 = vweird.f32 %v487
    %vm495 = vmor %vm493, %vm494
    %v496 = vsel %vm495, %v487, %v492
    %v497 = vrsqrt.pop %v366
    %v498 = vmul.f32 %v497, %v366
    %v499 = vmul.f32 %v498, %v497
    %v500 = vmul.f32 0.5, %v499
    %v501 = vsub.f32 1.5, %v500
    %v502 = vmul.f32 %v497, %v501
    %vm503 = vweird.f32 %v366
    %vm504 = vweird.f32 %v497
    %vm505 = vmor %vm503, %vm504
    %v506 = vsel %vm505, %v497, %v502
    %v507 = vrsqrt.pop %v367
    %v508 = vmul.f32 %v507, %v367
    %v509 = vmul.f32 %v508, %v507
    %v510 = vmul.f32 0.5, %v509
    %v511 = vsub.f32 1.5, %v510
    %v512 = vmul.f32 %v507, %v511
    %vm513 = vweird.f32 %v367
    %vm514 = vweird.f32 %v507
    %vm515 = vmor %vm513, %vm514
    %v516 = vsel %vm515, %v507, %v512
    %v517 = vrsqrt.pop %v368
    %v518 = vmul.f32 %v517, %v368
    %v519 = vmul.f32 %v518, %v517
    %v520 = vmul.f32 0.5, %v519
    %v521 = vsub.f32 1.5, %v520
    %v522 = vmul.f32 %v517, %v521
    %vm523 = vweird.f32 %v368
    %vm524 = vweird.f32 %v517
    %vm525 = vmor %vm523, %vm524
    %v526 = vsel %vm525, %v517, %v522
    %v527 = vrsqrt.pop %v369
    %v528 = vmul.f32 %v527, %v369
    %v529 = vmul.f32 %v528, %v527
    %v530 = vmul.f32 0.5, %v529
    %v531 = vsub.f32 1.5, %v530
    %v532 = vmul.f32 %v527, %v531
    %vm533 = vweird.f32 %v369
    %vm534 = vweird.f32 %v527
    %vm535 = vmor %vm533, %vm534
    %v536 = vsel %vm535, %v527, %v532
    %v537 = vrsqrt.pop %v370
    %v538 = vmul.f32 %v537, %v370
    %v539 = vmul.f32 %v538, %v537
    %v540 = vmul.f32 0.5, %v539
    %v541 = vsub.f32 1.5, %v540
    %v542 = vmul.f32 %v537, %v541
    %vm543 = vweird.f32 %v370
    %vm544 = vweird.f32 %v537
    %vm545 = vmor %vm543, %vm544
    %v546 = vsel %vm545, %v537, %v542
    %v547 = vrsqrt.pop %v371
    %v548 = vmul.f32 %v547, %v371
    %v549 = vmul.f32 %v548, %v547
    %v550 = vmul.f32 0.5, %v549
    %v551 = vsub.f32 1.5, %v550
    %v552 = vmul.f32 %v547, %v551
    %vm553 = vweird.f32 %v371
    %vm554 = vweird.f32 %v547
    %vm555 = vmor %vm553, %vm554
    %v556 = vsel %vm555, %v547, %v552
    %v557 = vrsqrt.pop %v372
    %v558 = vmul.f32 %v557, %v372
    %v559 = vmul.f32 %v558, %v557
    %v560 = vmul.f32 0.5, %v559
    %v561 = vsub.f32 1.5, %v560
    %v562 = vmul.f32 %v557, %v561
    %vm563 = vweird.f32 %v372
    %vm564 = vweird.f32 %v557
    %vm565 = vmor %vm563, %vm564
    %v566 = vsel %vm565, %v557, %v562
    %v567 = vrsqrt.pop %v373
    %v568 = vmul.f32 %v567, %v373
    %v569 = vmul.f32 %v568, %v567
    %v570 = vmul.f32 0.5, %v569
    %v571 = vsub.f32 1.5, %v570
    %v572 = vmul.f32 %v567, %v571
    %vm573 = vweird.f32 %v373
    %vm574 = vweird.f32 %v567
    %vm575 = vmor %vm573, %vm574
    %v576 = vsel %vm575, %v567, %v572
    %v577 = vrsqrt.pop %v374
    %v578 = vmul.f32 %v577, %v374
    %v579 = vmul.f32 %v578, %v577
    %v580 = vmul.f32 0.5, %v579
    %v581 = vsub.f32 1.5, %v580
    %v582 = vmul.f32 %v577, %v581
    %vm583 = vweird.f32 %v374
    %vm584 = vweird.f32 %v577
    %vm585 = vmor %vm583, %vm584
    %v586 = vsel %vm585, %v577, %v582
    %v587 = vrsqrt.pop %v375
    %v588 = vmul.f32 %v587, %v375
    %v589 = vmul.f32 %v588, %v587
    %v590 = vmul.f32 0.5, %v589
    %v591 = vsub.f32 1.5, %v590
    %v592 = vmul.f32 %v587, %v591
    %vm593 = vweird.f32 %v375
    %vm594 = vweird.f32 %v587
    %vm595 = vmor %vm593, %vm594
    %v596 = vsel %vm595, %v587, %v592
    %v597 = vrsqrt.pop %v376
    %v598 = vmul.f32 %v597, %v376
    %v599 = vmul.f32 %v598, %v597
    %v600 = vmul.f32 0.5, %v599
    %v601 = vsub.f32 1.5, %v600
    %v602 = vmul.f32 %v597, %v601
    %vm603 = vweird.f32 %v376
    %vm604 = vweird.f32 %v597
    %vm605 = vmor %vm603, %vm604
    %v606 = vsel %vm605, %v597, %v602
    %v607 = vrsqrt.pop %v377
    %v608 = vmul.f32 %v607, %v377
    %v609 = vmul.f32 %v608, %v607
    %v610 = vmul.f32 0.5, %v609
    %v611 = vsub.f32 1.5, %v610
    %v612 = vmul.f32 %v607, %v611
    %vm613 = vweird.f32 %v377
    %vm614 = vweird.f32 %v607
    %vm615 = vmor %vm613, %vm614
    %v616 = vsel %vm615, %v607, %v612
    %v617 = vrsqrt.pop %v378
    %v618 = vmul.f32 %v617, %v378
    %v619 = vmul.f32 %v618, %v617
    %v620 = vmul.f32 0.5, %v619
    %v621 = vsub.f32 1.5, %v620
    %v622 = vmul.f32 %v617, %v621
    %vm623 = vweird.f32 %v378
    %vm624 = vweird.f32 %v617
    %vm625 = vmor %vm623, %vm624
    %v626 = vsel %vm625, %v617, %v622
    %v627 = vrsqrt.pop %v379
    %v628 = vmul.f32 %v627, %v379
    %v629 = vmul.f32 %v628, %v627
    %v630 = vmul.f32 0.5, %v629
    %v631 = vsub.f32 1.5, %v630
    %v632 = vmul.f32 %v627, %v631
    %vm633 = vweird.f32 %v379
    %vm634 = vweird.f32 %v627
    %vm635 = vmor %vm633, %vm634
    %v636 = vsel %vm635, %v627, %v632
    %v637 = vrsqrt.pop %v380
    %v638 = vmul.f32 %v637, %v380
    %v639 = vmul.f32 %v638, %v637
    %v640 = vmul.f32 0.5, %v639
    %v641 = vsub.f32 1.5, %v640
    %v642 = vmul.f32 %v637, %v641
    %vm643 = vweird.f32 %v380
    %vm644 = vweird.f32 %v637
    %vm645 = vmor %vm643, %vm644
    %v646 = vsel %vm645, %v637, %v642
    %v647 = vrsqrt.pop %v381
    %v648 = vmul.f32 %v647, %v381
    %v649 = vmul.f32 %v648, %v647
    %v650 = vmul.f32 0.5, %v649
    %v651 = vsub.f32 1.5, %v650
    %v652 = vmul.f32 %v647, %v651
    %vm653 = vweird.f32 %v381
    %vm654 = vweird.f32 %v647
    %vm655 = vmor %vm653, %vm654
    %v656 = vsel %vm655, %v647, %v652
    %v657 = vrsqrt.pop %v382
    %v658 = vmul.f32 %v657, %v382
    %v659 = vmul.f32 %v658, %v657
    %v660 = vmul.f32 0.5, %v659
    %v661 = vsub.f32 1.5, %v660
    %v662 = vmul.f32 %v657, %v661
    %vm663 = vweird.f32 %v382
    %vm664 = vweird.f32 %v657
    %vm665 = vmor %vm663, %vm664
    %v666 = vsel %vm665, %v657, %v662
    %v667 = vrsqrt.pop %v383
    %v668 = vmul.f32 %v667, %v383
    %v669 = vmul.f32 %v668, %v667
    %v670 = vmul.f32 0.5, %v669
    %v671 = vsub.f32 1.5, %v670
    %v672 = vmul.f32 %v667, %v671
    %vm673 = vweird.f32 %v383
    %vm674 = vweird.f32 %v667
    %vm675 = vmor %vm673, %vm674
    %v676 = vsel %vm675, %v667, %v672
    %v677 = vrsqrt.pop %v384
    %v678 = vmul.f32 %v677, %v384
    %v679 = vmul.f32 %v678, %v677
    %v680 = vmul.f32 0.5, %v679
    %v681 = vsub.f32 1.5, %v680
    %v682 = vmul.f32 %v677, %v681
    %vm683 = vweird.f32 %v384
    %vm684 = vweird.f32 %v677
    %vm685 = vmor %vm683, %vm684
    %v686 = vsel %vm685, %v677, %v682
    %v687 = vrsqrt.pop %v385
    %v688 = vmul.f32 %v687, %v385
    %v689 = vmul.f32 %v688, %v687
    %v690 = vmul.f32 0.5, %v689
    %v691 = vsub.f32 1.5, %v690
    %v692 = vmul.f32 %v687, %v691
    %vm693 = vweird.f32 %v385
    %vm694 = vweird.f32 %v687
    %vm695 = vmor %vm693, %vm694
    %v696 = vsel %vm695, %v687, %v692
    %v697 = vrsqrt.pop %v386
    %v698 = vmul.f32 %v697, %v386
    %v699 = vmul.f32 %v698, %v697
    %v700 = vmul.f32 0.5, %v699
    %v701 = vsub.f32 1.5, %v700
    %v702 = vmul.f32 %v697, %v701
    %vm703 = vweird.f32 %v386
    %vm704 = vweird.f32 %v697
    %vm705 = vmor %vm703, %vm704
    %v706 = vsel %vm705, %v697, %v702
    %v707 = vmul.f32 %v195, %v396
    %v708 = vmul.f32 %v196, %v406
    %v709 = vmul.f32 %v197, %v416
    %v710 = vmul.f32 %v198, %v426
    %v711 = vmul.f32 %v199, %v436
    %v712 = vmul.f32 %v200, %v446
    %v713 = vmul.f32 %v201, %v456
    %v714 = vmul.f32 %v202, %v466
    %v715 = vmul.f32 %v203, %v476
    %v716 = vmul.f32 %v204, %v486
    %v717 = vmul.f32 %v205, %v496
    %v718 = vmul.f32 %v206, %v506
    %v719 = vmul.f32 %v207, %v516
    %v720 = vmul.f32 %v208, %v526
    %v721 = vmul.f32 %v209, %v536
    %v722 = vmul.f32 %v210, %v546
    %v723 = vmul.f32 %v211, %v556
    %v724 = vmul.f32 %v212, %v566
    %v725 = vmul.f32 %v213, %v576
    %v726 = vmul.f32 %v214, %v586
    %v727 = vmul.f32 %v215, %v596
    %v728 = vmul.f32 %v216, %v606
    %v729 = vmul.f32 %v217, %v616
    %v730 = vmul.f32 %v218, %v626
    %v731 = vmul.f32 %v219, %v636
    %v732 = vmul.f32 %v220, %v646
    %v733 = vmul.f32 %v221, %v656
    %v734 = vmul.f32 %v222, %v666
    %v735 = vmul.f32 %v223, %v676
    %v736 = vmul.f32 %v224, %v686
    %v737 = vmul.f32 %v225, %v696
    %v738 = vmul.f32 %v226, %v706
    %v739 = vld [vmem:[#allocation5] sm:$0x1]
    %v740 = vld [vmem:[#allocation5 + $0x1] sm:$0x1]
    %v741 = vld [vmem:[#allocation5 + $0x2] sm:$0x1]
    %v742 = vperm.slane %v739, 0
    %v743 = vmul.f32 %v707, %v742
    %v744 = vmul.f32 %v708, %v742
    %v745 = vmul.f32 %v709, %v742
    %v746 = vmul.f32 %v710, %v742
    %v747 = vmul.f32 %v711, %v742
    %v748 = vmul.f32 %v712, %v742
    %v749 = vmul.f32 %v713, %v742
    %v750 = vmul.f32 %v714, %v742
    %v751 = vmul.f32 %v715, %v742
    %v752 = vmul.f32 %v716, %v742
    %v753 = vmul.f32 %v717, %v742
    %v754 = vmul.f32 %v718, %v742
    %v755 = vmul.f32 %v719, %v742
    %v756 = vmul.f32 %v720, %v742
    %v757 = vmul.f32 %v721, %v742
    %v758 = vmul.f32 %v722, %v742
    %v759 = vmul.f32 %v723, %v742
    %v760 = vmul.f32 %v724, %v742
    %v761 = vmul.f32 %v725, %v742
    %v762 = vmul.f32 %v726, %v742
    %v763 = vmul.f32 %v727, %v742
    %v764 = vmul.f32 %v728, %v742
    %v765 = vmul.f32 %v729, %v742
    %v766 = vmul.f32 %v730, %v742
    %v767 = vmul.f32 %v731, %v742
    %v768 = vmul.f32 %v732, %v742
    %v769 = vmul.f32 %v733, %v742
    %v770 = vmul.f32 %v734, %v742
    %v771 = vmul.f32 %v735, %v742
    %v772 = vmul.f32 %v736, %v742
    %v773 = vmul.f32 %v737, %v742
    %v774 = vmul.f32 %v738, %v742
    %v775 = vperm.slane %v740, 0
    %v776 = vadd.f32 %v743, %v775
    %v777 = vadd.f32 %v744, %v775
    %v778 = vadd.f32 %v745, %v775
    %v779 = vadd.f32 %v746, %v775
    %v780 = vadd.f32 %v747, %v775
    %v781 = vadd.f32 %v748, %v775
    %v782 = vadd.f32 %v749, %v775
    %v783 = vadd.f32 %v750, %v775
    %v784 = vadd.f32 %v751, %v775
    %v785 = vadd.f32 %v752, %v775
    %v786 = vadd.f32 %v753, %v775
    %v787 = vadd.f32 %v754, %v775
    %v788 = vadd.f32 %v755, %v775
    %v789 = vadd.f32 %v756, %v775
    %v790 = vadd.f32 %v757, %v775
    %v791 = vadd.f32 %v758, %v775
    %v792 = vadd.f32 %v759, %v775
    %v793 = vadd.f32 %v760, %v775
    %v794 = vadd.f32 %v761, %v775
    %v795 = vadd.f32 %v762, %v775
    %v796 = vadd.f32 %v763, %v775
    %v797 = vadd.f32 %v764, %v775
    %v798 = vadd.f32 %v765, %v775
    %v799 = vadd.f32 %v766, %v775
    %v800 = vadd.f32 %v767, %v775
    %v801 = vadd.f32 %v768, %v775
    %v802 = vadd.f32 %v769, %v775
    %v803 = vadd.f32 %v770, %v775
    %v804 = vadd.f32 %v771, %v775
    %v805 = vadd.f32 %v772, %v775
    %v806 = vadd.f32 %v773, %v775
    %v807 = vadd.f32 %v774, %v775
    %v808 = vpack.c.bf16 %v777, %v776
    %v809 = vpack.c.bf16 %v779, %v778
    %v810 = vpack.c.bf16 %v781, %v780
    %v811 = vpack.c.bf16 %v783, %v782
    %v812 = vpack.c.bf16 %v785, %v784
    %v813 = vpack.c.bf16 %v787, %v786
    %v814 = vpack.c.bf16 %v789, %v788
    %v815 = vpack.c.bf16 %v791, %v790
    %v816 = vpack.c.bf16 %v793, %v792
    %v817 = vpack.c.bf16 %v795, %v794
    %v818 = vpack.c.bf16 %v797, %v796
    %v819 = vpack.c.bf16 %v799, %v798
    %v820 = vpack.c.bf16 %v801, %v800
    %v821 = vpack.c.bf16 %v803, %v802
    %v822 = vpack.c.bf16 %v805, %v804
    %v823 = vpack.c.bf16 %v807, %v806
    %v824 = vld [vmem:[#allocation7] sm:$0xf]
    %v825 = vld [vmem:[#allocation7 + $0x4] sm:$0xf]
    %v826 = vld [vmem:[#allocation7 + $0x8] sm:$0xf]
    %v827 = vld [vmem:[#allocation7 + $0xc] sm:$0xf]
    %v828 = vld [vmem:[#allocation7 + $0x10] sm:$0xf]
    %v829 = vld [vmem:[#allocation7 + $0x14] sm:$0xf]
    %v830 = vld [vmem:[#allocation7 + $0x18] sm:$0xf]
    %v831 = vld [vmem:[#allocation7 + $0x1c] sm:$0xf]
    %v832 = vld [vmem:[#allocation7 + $0x20] sm:$0xf]
    %v833 = vld [vmem:[#allocation7 + $0x24] sm:$0xf]
    %v834 = vld [vmem:[#allocation7 + $0x28] sm:$0xf]
    %v835 = vld [vmem:[#allocation7 + $0x2c] sm:$0xf]
    %v836 = vld [vmem:[#allocation7 + $0x30] sm:$0xf]
    %v837 = vld [vmem:[#allocation7 + $0x34] sm:$0xf]
    %v838 = vld [vmem:[#allocation7 + $0x38] sm:$0xf]
    %v839 = vld [vmem:[#allocation7 + $0x3c] sm:$0xf]
    %v840 = vperm.slane %v741, 0
    %v857 = vunpack.c.l.b16 %v824
    %v858 = vunpack.c.l.b16 %v825
    %v859 = vunpack.c.l.b16 %v826
    %v860 = vunpack.c.l.b16 %v827
    %v861 = vunpack.c.l.b16 %v828
    %v862 = vunpack.c.l.b16 %v829
    %v863 = vunpack.c.l.b16 %v830
    %v864 = vunpack.c.l.b16 %v831
    %v865 = vunpack.c.l.b16 %v832
    %v866 = vunpack.c.l.b16 %v833
    %v867 = vunpack.c.l.b16 %v834
    %v868 = vunpack.c.l.b16 %v835
    %v869 = vunpack.c.l.b16 %v836
    %v870 = vunpack.c.l.b16 %v837
    %v871 = vunpack.c.l.b16 %v838
    %v872 = vunpack.c.l.b16 %v839
    %v873 = vpack.c.b16 %v858, %v857
    %v874 = vpack.c.b16 %v860, %v859
    %v875 = vpack.c.b16 %v862, %v861
    %v876 = vpack.c.b16 %v864, %v863
    %v877 = vpack.c.b16 %v866, %v865
    %v878 = vpack.c.b16 %v868, %v867
    %v879 = vpack.c.b16 %v870, %v869
    %v880 = vpack.c.b16 %v872, %v871
    %889 = vmatpush.bf16.msra.mxu0 %v880
    %890 = vmatpush.bf16.msra.mxu0 %v879
    %891 = vmatpush.bf16.msra.mxu0 %v878
    %892 = vmatpush.bf16.msra.mxu0 %v877
    %893 = vmatpush.bf16.msra.mxu0 %v876
    %894 = vmatpush.bf16.msra.mxu0 %v875
    %895 = vmatpush.bf16.msra.mxu0 %v874
    %896 = vmatpush.bf16.msra.mxu0 %v873
    %897 = vmatmul.bf16.gmra.mxu0 %v808
    %v898 = vpop.f32.mrf.mxu0
    %v899 = vadd.f32 %v840, %v898
    %v900 = vpop.f32.mrf.mxu0
    %v901 = vadd.f32 %v840, %v900
    %902 = vmatmul.bf16.gmra.mxu0 %v809
    %v903 = vpop.f32.mrf.mxu0
    %v904 = vadd.f32 %v840, %v903
    %v905 = vpop.f32.mrf.mxu0
    %v906 = vadd.f32 %v840, %v905
    %907 = vmatmul.bf16.gmra.mxu0 %v810
    %v908 = vpop.f32.mrf.mxu0
    %v909 = vadd.f32 %v840, %v908
    %v910 = vpop.f32.mrf.mxu0
    %v911 = vadd.f32 %v840, %v910
    %912 = vmatmul.bf16.gmra.mxu0 %v811
    %v913 = vpop.f32.mrf.mxu0
    %v914 = vadd.f32 %v840, %v913
    %v915 = vpop.f32.mrf.mxu0
    %v916 = vadd.f32 %v840, %v915
    %917 = vmatmul.bf16.gmra.mxu0 %v812
    %v918 = vpop.f32.mrf.mxu0
    %v919 = vadd.f32 %v840, %v918
    %v920 = vpop.f32.mrf.mxu0
    %v921 = vadd.f32 %v840, %v920
    %922 = vmatmul.bf16.gmra.mxu0 %v813
    %v923 = vpop.f32.mrf.mxu0
    %v924 = vadd.f32 %v840, %v923
    %v925 = vpop.f32.mrf.mxu0
    %v926 = vadd.f32 %v840, %v925
    %927 = vmatmul.bf16.gmra.mxu0 %v814
    %v928 = vpop.f32.mrf.mxu0
    %v929 = vadd.f32 %v840, %v928
    %v930 = vpop.f32.mrf.mxu0
    %v931 = vadd.f32 %v840, %v930
    %932 = vmatmul.bf16.gmra.mxu0 %v815
    %v933 = vpop.f32.mrf.mxu0
    %v934 = vadd.f32 %v840, %v933
    %v935 = vpop.f32.mrf.mxu0
    %v936 = vadd.f32 %v840, %v935
    %937 = vmatmul.bf16.gmra.mxu0 %v816
    %v938 = vpop.f32.mrf.mxu0
    %v939 = vadd.f32 %v840, %v938
    %v940 = vpop.f32.mrf.mxu0
    %v941 = vadd.f32 %v840, %v940
    %942 = vmatmul.bf16.gmra.mxu0 %v817
    %v943 = vpop.f32.mrf.mxu0
    %v944 = vadd.f32 %v840, %v943
    %v945 = vpop.f32.mrf.mxu0
    %v946 = vadd.f32 %v840, %v945
    %947 = vmatmul.bf16.gmra.mxu0 %v818
    %v948 = vpop.f32.mrf.mxu0
    %v949 = vadd.f32 %v840, %v948
    %v950 = vpop.f32.mrf.mxu0
    %v951 = vadd.f32 %v840, %v950
    %952 = vmatmul.bf16.gmra.mxu0 %v819
    %v953 = vpop.f32.mrf.mxu0
    %v954 = vadd.f32 %v840, %v953
    %v955 = vpop.f32.mrf.mxu0
    %v956 = vadd.f32 %v840, %v955
    %957 = vmatmul.bf16.gmra.mxu0 %v820
    %v958 = vpop.f32.mrf.mxu0
    %v959 = vadd.f32 %v840, %v958
    %v960 = vpop.f32.mrf.mxu0
    %v961 = vadd.f32 %v840, %v960
    %962 = vmatmul.bf16.gmra.mxu0 %v821
    %v963 = vpop.f32.mrf.mxu0
    %v964 = vadd.f32 %v840, %v963
    %v965 = vpop.f32.mrf.mxu0
    %v966 = vadd.f32 %v840, %v965
    %967 = vmatmul.bf16.gmra.mxu0 %v822
    %v968 = vpop.f32.mrf.mxu0
    %v969 = vadd.f32 %v840, %v968
    %v970 = vpop.f32.mrf.mxu0
    %v971 = vadd.f32 %v840, %v970
    %972 = vmatmul.bf16.gmra.mxu0 %v823
    %v973 = vpop.f32.mrf.mxu0
    %v974 = vadd.f32 %v840, %v973
    %v975 = vpop.f32.mrf.mxu0
    %v976 = vadd.f32 %v840, %v975
    %977 = vdwg.mxu0
    %v978 = vadd.f32 %v60, %v899
    %v979 = vadd.f32 %v61, %v901
    %v980 = vadd.f32 %v62, %v904
    %v981 = vadd.f32 %v63, %v906
    %v982 = vadd.f32 %v64, %v909
    %v983 = vadd.f32 %v65, %v911
    %v984 = vadd.f32 %v66, %v914
    %v985 = vadd.f32 %v67, %v916
    %v986 = vadd.f32 %v68, %v919
    %v987 = vadd.f32 %v69, %v921
    %v988 = vadd.f32 %v70, %v924
    %v989 = vadd.f32 %v71, %v926
    %v990 = vadd.f32 %v72, %v929
    %v991 = vadd.f32 %v73, %v931
    %v992 = vadd.f32 %v74, %v934
    %v993 = vadd.f32 %v75, %v936
    %v994 = vadd.f32 %v76, %v939
    %v995 = vadd.f32 %v77, %v941
    %v996 = vadd.f32 %v78, %v944
    %v997 = vadd.f32 %v79, %v946
    %v998 = vadd.f32 %v80, %v949
    %v999 = vadd.f32 %v81, %v951
    %v1000 = vadd.f32 %v82, %v954
    %v1001 = vadd.f32 %v83, %v956
    %v1002 = vadd.f32 %v84, %v959
    %v1003 = vadd.f32 %v85, %v961
    %v1004 = vadd.f32 %v86, %v964
    %v1005 = vadd.f32 %v87, %v966
    %v1006 = vadd.f32 %v88, %v969
    %v1007 = vadd.f32 %v89, %v971
    %v1008 = vadd.f32 %v90, %v974
    %v1009 = vadd.f32 %v91, %v976
    %1010 = vst [vmem:[#allocation8] sm:$0xff] %v978
    %1011 = vst [vmem:[#allocation8 + $0x8] sm:$0xff] %v979
    %1012 = vst [vmem:[#allocation8 + $0x10] sm:$0xff] %v980
    %1013 = vst [vmem:[#allocation8 + $0x18] sm:$0xff] %v981
    %1014 = vst [vmem:[#allocation8 + $0x20] sm:$0xff] %v982
    %1015 = vst [vmem:[#allocation8 + $0x28] sm:$0xff] %v983
    %1016 = vst [vmem:[#allocation8 + $0x30] sm:$0xff] %v984
    %1017 = vst [vmem:[#allocation8 + $0x38] sm:$0xff] %v985
    %1018 = vst [vmem:[#allocation8 + $0x40] sm:$0xff] %v986
    %1019 = vst [vmem:[#allocation8 + $0x48] sm:$0xff] %v987
    %1020 = vst [vmem:[#allocation8 + $0x50] sm:$0xff] %v988
    %1021 = vst [vmem:[#allocation8 + $0x58] sm:$0xff] %v989
    %1022 = vst [vmem:[#allocation8 + $0x60] sm:$0xff] %v990
    %1023 = vst [vmem:[#allocation8 + $0x68] sm:$0xff] %v991
    %1024 = vst [vmem:[#allocation8 + $0x70] sm:$0xff] %v992
    %1025 = vst [vmem:[#allocation8 + $0x78] sm:$0xff] %v993
    %1026 = vst [vmem:[#allocation8 + $0x80] sm:$0xff] %v994
    %1027 = vst [vmem:[#allocation8 + $0x88] sm:$0xff] %v995
    %1028 = vst [vmem:[#allocation8 + $0x90] sm:$0xff] %v996
    %1029 = vst [vmem:[#allocation8 + $0x98] sm:$0xff] %v997
    %1030 = vst [vmem:[#allocation8 + $0xa0] sm:$0xff] %v998
    %1031 = vst [vmem:[#allocation8 + $0xa8] sm:$0xff] %v999
    %1032 = vst [vmem:[#allocation8 + $0xb0] sm:$0xff] %v1000
    %1033 = vst [vmem:[#allocation8 + $0xb8] sm:$0xff] %v1001
    %1034 = vst [vmem:[#allocation8 + $0xc0] sm:$0xff] %v1002
    %1035 = vst [vmem:[#allocation8 + $0xc8] sm:$0xff] %v1003
    %1036 = vst [vmem:[#allocation8 + $0xd0] sm:$0xff] %v1004
    %1037 = vst [vmem:[#allocation8 + $0xd8] sm:$0xff] %v1005
    %1038 = vst [vmem:[#allocation8 + $0xe0] sm:$0xff] %v1006
    %1039 = vst [vmem:[#allocation8 + $0xe8] sm:$0xff] %v1007
    %1040 = vst [vmem:[#allocation8 + $0xf0] sm:$0xff] %v1008
    %1041 = vst [vmem:[#allocation8 + $0xf8] sm:$0xff] %v1009
    // Predicated region
    $region26: #{tpu_custom_call.1} parent=1 // pred_check
      _
    $region27: #{tpu_custom_call.1} parent=1 // pred_check_branch
      %1043 = sbr.rel (0) target = $region29
    $region28: #{tpu_custom_call.1} parent=1 // pred_region
      %1045 = vsyncadd [#allocation4], 0
      %s1046 = sshll.u32 [#allocation8], 4
      %s1047 = int_to_ptr.vmem [resolvable:$true] %s1046
      %s1048 = sshll.u32 %s3, 4
      %s1049 = int_to_ptr.hbm [resolvable:$true] %s1048
      %1054 = dma.vmem_to_hbm [thread:$0]  %s1047, 4096, %s1049, [#allocation4], 128, 128, 8
    $region29: #{tpu_custom_call.1} parent=1 // pred_fallthru
      _
    // Predicated region
    $region30: #{tpu_custom_call.1} parent=1 // pred_check
      _
    $region31: #{tpu_custom_call.1} parent=1 // pred_check_branch
      %1056 = sbr.rel (0) target = $region33
    $region32: #{tpu_custom_call.1} parent=1 // pred_region
      %1058 = dma.done [#allocation4], 4096
    $region33: #{tpu_custom_call.1} parent=1 // pred_fallthru
      _
    %1059 = vsyncpa [#allocation3], 1
    %1060 = vsyncpa [#allocation6], 1
    %1061 = vsyncpa [#allocation4], 1

</llo_original>
